<compile_context>
chip_gen: v7x
topology: tpu7x:2x2x1
jax: 0.10.0
libtpu: 0.0.40
codegen_flags: <defaults>
</compile_context>

<pallas_src>
import jax
import jax.numpy as jnp
from jax.experimental import pallas as pl
from jax.experimental.pallas import tpu as pltpu

INPUT_DIM = 95
HIDDEN_DIM = 128
OUTPUT_DIM = 95

SUBLANE = 8
MAX_TILE_B = 2048  # batch rows per grid step; sweep 1024-4096 if tuning


def _round_up(x, m):
    return (x + m - 1) // m * m


def _mlp_kernel(x_ref, w1_ref, b1_ref, w2_ref, b2_ref, w3_ref, b3_ref, o_ref):
    # One batch tile per grid step; all three GEMMs + ReLUs fused so the
    # intermediate activations never touch HBM.
    x = x_ref[...]

    h1 = jnp.dot(x, w1_ref[...], preferred_element_type=jnp.float32)
    h1 = jnp.maximum(h1 + b1_ref[...], 0.0)

    h2 = jnp.dot(h1, w2_ref[...], preferred_element_type=jnp.float32)
    h2 = jnp.maximum(h2 + b2_ref[...], 0.0)

    out = jnp.dot(h2, w3_ref[...], preferred_element_type=jnp.float32)
    o_ref[...] = (out + b3_ref[...]).astype(o_ref.dtype)


def prepare_params(params):
    """One-time weight prep (call once at init, NOT per forward):
    transpose PyTorch-convention [out, in] weights to [in, out] and reshape
    biases to (1, out) so the kernel does plain x @ W + b."""
    return {
        "w1": jnp.asarray(params["fc1_w"], jnp.float32).T,          # [95, 128]
        "b1": jnp.asarray(params["fc1_b"], jnp.float32)[None, :],   # [1, 128]
        "w2": jnp.asarray(params["fc2_w"], jnp.float32).T,          # [128, 128]
        "b2": jnp.asarray(params["fc2_b"], jnp.float32)[None, :],   # [1, 128]
        "w3": jnp.asarray(params["fc_out_w"], jnp.float32).T,       # [128, 95]
        "b3": jnp.asarray(params["fc_out_b"], jnp.float32)[None, :],  # [1, 95]
    }
    # TODO(synk): a bf16 weight/x variant (f32 accumulate) would roughly 2-4x
    # the MXU rate on v5e/v6e; kept f32 to match the f32 PyTorch reference.


@jax.jit
def powerball_mlp_forward(x, prepared):
    """x: [batch, 95] float32. prepared: output of prepare_params."""
    batch = x.shape[0]
    bp = _round_up(batch, SUBLANE)
    if bp != batch:  # only pad rows when batch isn't sublane-aligned
        x = jnp.pad(x, ((0, bp - batch), (0, 0)))

    tile_b = min(MAX_TILE_B, bp)
    grid = (pl.cdiv(bp, tile_b),)

    w1, b1 = prepared["w1"], prepared["b1"]
    w2, b2 = prepared["w2"], prepared["b2"]
    w3, b3 = prepared["w3"], prepared["b3"]

    flops = 2 * bp * (INPUT_DIM * HIDDEN_DIM
                      + HIDDEN_DIM * HIDDEN_DIM
                      + HIDDEN_DIM * OUTPUT_DIM)
    bytes_accessed = 4 * (bp * INPUT_DIM + bp * OUTPUT_DIM
                          + INPUT_DIM * HIDDEN_DIM
                          + HIDDEN_DIM * HIDDEN_DIM
                          + HIDDEN_DIM * OUTPUT_DIM
                          + 2 * HIDDEN_DIM + OUTPUT_DIM)

    out = pl.pallas_call(
        _mlp_kernel,
        out_shape=jax.ShapeDtypeStruct((bp, OUTPUT_DIM), jnp.float32),
        grid_spec=pl.GridSpec(
            grid=grid,
            in_specs=[
                # x: blocked over batch, full (unpadded) 95-wide feature axis.
                pl.BlockSpec((tile_b, INPUT_DIM), lambda i: (i, 0)),
                # Weights / biases: constant index_map -> stay VMEM-resident.
                pl.BlockSpec((INPUT_DIM, HIDDEN_DIM), lambda i: (0, 0)),
                pl.BlockSpec((1, HIDDEN_DIM), lambda i: (0, 0)),
                pl.BlockSpec((HIDDEN_DIM, HIDDEN_DIM), lambda i: (0, 0)),
                pl.BlockSpec((1, HIDDEN_DIM), lambda i: (0, 0)),
                pl.BlockSpec((HIDDEN_DIM, OUTPUT_DIM), lambda i: (0, 0)),
                pl.BlockSpec((1, OUTPUT_DIM), lambda i: (0, 0)),
            ],
            out_specs=pl.BlockSpec((tile_b, OUTPUT_DIM), lambda i: (i, 0)),
        ),
        compiler_params=pltpu.CompilerParams(
            dimension_semantics=("parallel",),
        ),
        cost_estimate=pl.CostEstimate(
            flops=flops, transcendentals=0, bytes_accessed=bytes_accessed),
    )(x, w1, b1, w2, b2, w3, b3)

    if bp != batch:
        out = out[:batch]
    return out


def init_params(key):
    """Deterministic params with PyTorch nn.Linear shapes/convention."""
    ks = jax.random.split(key, 6)

    def linear_init(kw, kb, in_dim, out_dim):
        bound = 1.0 / jnp.sqrt(jnp.float32(in_dim))
        w = jax.random.uniform(kw, (out_dim, in_dim), jnp.float32, -bound, bound)
        b = jax.random.uniform(kb, (out_dim,), jnp.float32, -bound, bound)
        return w, b

    fc1_w, fc1_b = linear_init(ks[0], ks[1], INPUT_DIM, HIDDEN_DIM)
    fc2_w, fc2_b = linear_init(ks[2], ks[3], HIDDEN_DIM, HIDDEN_DIM)
    fc_out_w, fc_out_b = linear_init(ks[4], ks[5], HIDDEN_DIM, OUTPUT_DIM)
    return {
        "fc1_w": fc1_w, "fc1_b": fc1_b,
        "fc2_w": fc2_w, "fc2_b": fc2_b,
        "fc_out_w": fc_out_w, "fc_out_b": fc_out_b,
    }


def reference_forward(x, p):
    h = jnp.maximum(x @ p["fc1_w"].T + p["fc1_b"], 0.0)
    h = jnp.maximum(h @ p["fc2_w"].T + p["fc2_b"], 0.0)
    return h @ p["fc_out_w"].T + p["fc_out_b"]


if __name__ == "__main__":
    key = jax.random.PRNGKey(0)
    k_param, k_x = jax.random.split(key)
    params = init_params(k_param)
    prepared = prepare_params(params)  # one-time weight prep, outside forward

    batch = 4
    x = jax.random.normal(k_x, (batch, INPUT_DIM), jnp.float32)

    out = powerball_mlp_forward(x, prepared)
    out = jax.block_until_ready(out)

    ref = reference_forward(x, params)
    assert out.shape == (batch, OUTPUT_DIM), out.shape
    assert jnp.allclose(out, ref, atol=1e-4, rtol=1e-4), (
        float(jnp.max(jnp.abs(out - ref)))
    )
    print("KERNEL_OK")
</pallas_src>

<mosaic_0001>
module attributes {stable_mosaic.version = 11 : i64} {
  func.func @_mlp_kernel(%arg0: i32, %arg1: memref<8x95xf32, #tpu.memory_space<vmem>>, %arg2: memref<95x128xf32, #tpu.memory_space<vmem>>, %arg3: memref<1x128xf32, #tpu.memory_space<vmem>>, %arg4: memref<128x128xf32, #tpu.memory_space<vmem>>, %arg5: memref<1x128xf32, #tpu.memory_space<vmem>>, %arg6: memref<128x95xf32, #tpu.memory_space<vmem>>, %arg7: memref<1x95xf32, #tpu.memory_space<vmem>>, %arg8: memref<8x95xf32, #tpu.memory_space<vmem>>) attributes {dimension_semantics = [#tpu.dimension_semantics<parallel>], iteration_bounds = array<i64: 1>, scalar_prefetch = 0 : i64, scratch_operands = 0 : i64, tpu.core_type = #tpu.core_type<tc>, window_params = [{transform_indices = @transform_0, window_bounds = array<i64: 8, 95>}, {pipeline_mode = #tpu.pipeline_mode<synchronous>, transform_indices = @transform_1, window_bounds = array<i64: 95, 128>}, {pipeline_mode = #tpu.pipeline_mode<synchronous>, transform_indices = @transform_2, window_bounds = array<i64: 1, 128>}, {pipeline_mode = #tpu.pipeline_mode<synchronous>, transform_indices = @transform_3, window_bounds = array<i64: 128, 128>}, {pipeline_mode = #tpu.pipeline_mode<synchronous>, transform_indices = @transform_4, window_bounds = array<i64: 1, 128>}, {pipeline_mode = #tpu.pipeline_mode<synchronous>, transform_indices = @transform_5, window_bounds = array<i64: 128, 95>}, {pipeline_mode = #tpu.pipeline_mode<synchronous>, transform_indices = @transform_6, window_bounds = array<i64: 1, 95>}, {transform_indices = @transform_7, window_bounds = array<i64: 8, 95>}]} {
    %c0 = arith.constant 0 : index
    %c0_0 = arith.constant 0 : index
    %0 = vector.load %arg1[%c0, %c0_0] : memref<8x95xf32, #tpu.memory_space<vmem>>, vector<8x95xf32>
    %c0_1 = arith.constant 0 : index
    %c0_2 = arith.constant 0 : index
    %1 = vector.load %arg2[%c0_1, %c0_2] : memref<95x128xf32, #tpu.memory_space<vmem>>, vector<95x128xf32>
    %cst = arith.constant dense<0.000000e+00> : vector<8x128xf32>
    %2 = tpu.matmul %0, %1, %cst {dimension_numbers = #tpu.dot_dimension_numbers<[1], [0], [0], [1], [0, 0, 1, 1], [], []>} : vector<8x95xf32>, vector<95x128xf32>, vector<8x128xf32> -> vector<8x128xf32>
    %c0_3 = arith.constant 0 : index
    %c0_4 = arith.constant 0 : index
    %3 = vector.load %arg3[%c0_3, %c0_4] : memref<1x128xf32, #tpu.memory_space<vmem>>, vector<1x128xf32>
    %4 = vector.broadcast %3 : vector<1x128xf32> to vector<8x128xf32>
    %5 = arith.addf %2, %4 : vector<8x128xf32>
    %cst_5 = arith.constant 0.000000e+00 : f32
    %6 = vector.broadcast %cst_5 : f32 to vector<8x128xf32>
    %7 = arith.maximumf %5, %6 : vector<8x128xf32>
    %c0_6 = arith.constant 0 : index
    %c0_7 = arith.constant 0 : index
    %8 = vector.load %arg4[%c0_6, %c0_7] : memref<128x128xf32, #tpu.memory_space<vmem>>, vector<128x128xf32>
    %cst_8 = arith.constant dense<0.000000e+00> : vector<8x128xf32>
    %9 = tpu.matmul %7, %8, %cst_8 {dimension_numbers = #tpu.dot_dimension_numbers<[1], [0], [0], [1], [0, 0, 1, 1], [], []>} : vector<8x128xf32>, vector<128x128xf32>, vector<8x128xf32> -> vector<8x128xf32>
    %c0_9 = arith.constant 0 : index
    %c0_10 = arith.constant 0 : index
    %10 = vector.load %arg5[%c0_9, %c0_10] : memref<1x128xf32, #tpu.memory_space<vmem>>, vector<1x128xf32>
    %11 = vector.broadcast %10 : vector<1x128xf32> to vector<8x128xf32>
    %12 = arith.addf %9, %11 : vector<8x128xf32>
    %cst_11 = arith.constant 0.000000e+00 : f32
    %13 = vector.broadcast %cst_11 : f32 to vector<8x128xf32>
    %14 = arith.maximumf %12, %13 : vector<8x128xf32>
    %c0_12 = arith.constant 0 : index
    %c0_13 = arith.constant 0 : index
    %15 = vector.load %arg6[%c0_12, %c0_13] : memref<128x95xf32, #tpu.memory_space<vmem>>, vector<128x95xf32>
    %cst_14 = arith.constant dense<0.000000e+00> : vector<8x95xf32>
    %16 = tpu.matmul %14, %15, %cst_14 {dimension_numbers = #tpu.dot_dimension_numbers<[1], [0], [0], [1], [0, 0, 1, 1], [], []>} : vector<8x128xf32>, vector<128x95xf32>, vector<8x95xf32> -> vector<8x95xf32>
    %c0_15 = arith.constant 0 : index
    %c0_16 = arith.constant 0 : index
    %17 = vector.load %arg7[%c0_15, %c0_16] : memref<1x95xf32, #tpu.memory_space<vmem>>, vector<1x95xf32>
    %18 = vector.broadcast %17 : vector<1x95xf32> to vector<8x95xf32>
    %19 = arith.addf %16, %18 : vector<8x95xf32>
    %c0_17 = arith.constant 0 : index
    %c0_18 = arith.constant 0 : index
    %20 = vector.load %arg8[%c0_17, %c0_18] : memref<8x95xf32, #tpu.memory_space<vmem>>, vector<8x95xf32>
    tpu.vector_store %arg8[%c0_17, %c0_18], %19 {strides = array<i32>} : memref<8x95xf32, #tpu.memory_space<vmem>>, vector<8x95xf32>,
    return
  }
  func.func @transform_0(%arg0: i32) -> (i32, i32) {
    %c0_i32 = arith.constant 0 : i32
    %c0_i32_0 = arith.constant 0 : i32
    return %arg0, %c0_i32 : i32, i32
  }
  func.func @transform_1(%arg0: i32) -> (i32, i32) {
    %c0_i32 = arith.constant 0 : i32
    %c0_i32_0 = arith.constant 0 : i32
    %c0_i32_1 = arith.constant 0 : i32
    return %c0_i32, %c0_i32_0 : i32, i32
  }
  func.func @transform_2(%arg0: i32) -> (i32, i32) {
    %c0_i32 = arith.constant 0 : i32
    %c0_i32_0 = arith.constant 0 : i32
    %c0_i32_1 = arith.constant 0 : i32
    return %c0_i32, %c0_i32_0 : i32, i32
  }
  func.func @transform_3(%arg0: i32) -> (i32, i32) {
    %c0_i32 = arith.constant 0 : i32
    %c0_i32_0 = arith.constant 0 : i32
    %c0_i32_1 = arith.constant 0 : i32
    return %c0_i32, %c0_i32_0 : i32, i32
  }
  func.func @transform_4(%arg0: i32) -> (i32, i32) {
    %c0_i32 = arith.constant 0 : i32
    %c0_i32_0 = arith.constant 0 : i32
    %c0_i32_1 = arith.constant 0 : i32
    return %c0_i32, %c0_i32_0 : i32, i32
  }
  func.func @transform_5(%arg0: i32) -> (i32, i32) {
    %c0_i32 = arith.constant 0 : i32
    %c0_i32_0 = arith.constant 0 : i32
    %c0_i32_1 = arith.constant 0 : i32
    return %c0_i32, %c0_i32_0 : i32, i32
  }
  func.func @transform_6(%arg0: i32) -> (i32, i32) {
    %c0_i32 = arith.constant 0 : i32
    %c0_i32_0 = arith.constant 0 : i32
    %c0_i32_1 = arith.constant 0 : i32
    return %c0_i32, %c0_i32_0 : i32, i32
  }
  func.func @transform_7(%arg0: i32) -> (i32, i32) {
    %c0_i32 = arith.constant 0 : i32
    %c0_i32_0 = arith.constant 0 : i32
    return %arg0, %c0_i32 : i32, i32
  }
}

</mosaic_0001>

<llo_original>
// kernel: powerball_mlp_forward.1
$region0: #{powerball_mlp_forward.1}
  #allocation0 [shape = 'u32[]', space=smem, size = 0x4, offset = 0x4, fixed_abs, tag = 'smem constant byte address 0x4 - core index']
  #allocation1 [shape = 'u32[144,128]{1,0:T(1,128)}', space=vmem, size = 0x12000, scoped, tag = 'internal scratch']
  %s0 = inlined_call_operand.vmem [shape: f32[8,95], index: 0, kind: input, shape index: {}]
  %s1 = inlined_call_operand.vmem [shape: f32[95,128], index: 1, kind: input, shape index: {}]
  %s2 = inlined_call_operand.vmem [shape: f32[1,128], index: 2, kind: input, shape index: {}]
  %s3 = inlined_call_operand.vmem [shape: f32[128,128], index: 3, kind: input, shape index: {}]
  %s4 = inlined_call_operand.vmem [shape: f32[1,128], index: 4, kind: input, shape index: {}]
  %s5 = inlined_call_operand.vmem [shape: f32[128,95], index: 5, kind: input, shape index: {}]
  %s6 = inlined_call_operand.vmem [shape: f32[1,95], index: 6, kind: input, shape index: {}]
  %s7 = inlined_call_operand.vmem [shape: f32[8,95], index: 7, kind: output, shape index: {}]
  %s8 = sld [smem:[#allocation0]]
  $region38: #{powerball_mlp_forward.1} parent=0
    _
  %s10 = ssub.s32 1, %s8
  %s11 = scalar_select 0, %s10, %s8
  // Predicated region
  $region2: #{powerball_mlp_forward.1} parent=0 // pred_check
    _
  $region3: #{powerball_mlp_forward.1} parent=0 // pred_check_branch
    %13 = sbr.rel (0) target = $region5
  $region4: #{powerball_mlp_forward.1} parent=0 // pred_region
    _
  $region5: #{powerball_mlp_forward.1} parent=0 // pred_fallthru
    _
  // Predicated region
  $region6: #{powerball_mlp_forward.1} parent=0 // pred_check
    _
  $region7: #{powerball_mlp_forward.1} parent=0 // pred_check_branch
    %15 = sbr.rel (0) target = $region9
  $region8: #{powerball_mlp_forward.1} parent=0 // pred_region
    _
  $region9: #{powerball_mlp_forward.1} parent=0 // pred_fallthru
    _
  // Predicated region
  $region10: #{powerball_mlp_forward.1} parent=0 // pred_check
    _
  $region11: #{powerball_mlp_forward.1} parent=0 // pred_check_branch
    %17 = sbr.rel (0) target = $region13
  $region12: #{powerball_mlp_forward.1} parent=0 // pred_region
    _
  $region13: #{powerball_mlp_forward.1} parent=0 // pred_fallthru
    _
  // Predicated region
  $region14: #{powerball_mlp_forward.1} parent=0 // pred_check
    _
  $region15: #{powerball_mlp_forward.1} parent=0 // pred_check_branch
    %19 = sbr.rel (0) target = $region17
  $region16: #{powerball_mlp_forward.1} parent=0 // pred_region
    _
  $region17: #{powerball_mlp_forward.1} parent=0 // pred_fallthru
    _
  // Predicated region
  $region18: #{powerball_mlp_forward.1} parent=0 // pred_check
    _
  $region19: #{powerball_mlp_forward.1} parent=0 // pred_check_branch
    %21 = sbr.rel (0) target = $region21
  $region20: #{powerball_mlp_forward.1} parent=0 // pred_region
    _
  $region21: #{powerball_mlp_forward.1} parent=0 // pred_fallthru
    _
  // Predicated region
  $region22: #{powerball_mlp_forward.1} parent=0 // pred_check
    _
  $region23: #{powerball_mlp_forward.1} parent=0 // pred_check_branch
    %23 = sbr.rel (0) target = $region25
  $region24: #{powerball_mlp_forward.1} parent=0 // pred_region
    _
  $region25: #{powerball_mlp_forward.1} parent=0 // pred_fallthru
    _
  // Predicated region
  $region26: #{powerball_mlp_forward.1} parent=0 // pred_check
    _
  $region27: #{powerball_mlp_forward.1} parent=0 // pred_check_branch
    %25 = sbr.rel (0) target = $region29
  $region28: #{powerball_mlp_forward.1} parent=0 // pred_region
    _
  $region29: #{powerball_mlp_forward.1} parent=0 // pred_fallthru
    _
  %v26 = vld [vmem:[%s0] sm:$0xff]
  %v27 = vld [vmem:[%s1] sm:$0xff]
  %v28 = vld [vmem:[%s1 + $0x8] sm:$0xff]
  %v29 = vld [vmem:[%s1 + $0x10] sm:$0xff]
  %v30 = vld [vmem:[%s1 + $0x18] sm:$0xff]
  %v31 = vld [vmem:[%s1 + $0x20] sm:$0xff]
  %v32 = vld [vmem:[%s1 + $0x28] sm:$0xff]
  %v33 = vld [vmem:[%s1 + $0x30] sm:$0xff]
  %v34 = vld [vmem:[%s1 + $0x38] sm:$0xff]
  %v35 = vld [vmem:[%s1 + $0x40] sm:$0xff]
  %v36 = vld [vmem:[%s1 + $0x48] sm:$0xff]
  %v37 = vld [vmem:[%s1 + $0x50] sm:$0xff]
  %v38 = vld [vmem:[%s1 + $0x58] sm:$0x7f]
  %v39 = vld [vmem:[%s2] sm:$0x1]
  %v41 = vlaneseq
  %v42 = vshrl.u32 %v41, 7
  %v43 = vsub.s32 0, %v42
  %v44 = vrot.slane %v39, %v43
  %vm46 = vcmask 777216
  %v48 = vsel %vm46, %v26, 0
  %vm50 = vcmask 1046528
  %v52 = vsel %vm50, %v38, 0
  %54 = vmatprep.subr.mxu0 0.0
  %55 = vmatpush1.msra.mxu0 %v27
  %56 = vmatprep.subr.mxu0 0.0
  %57 = vmatpush1.msra.mxu0 %v28
  %58 = vmatprep.subr.mxu0 0.0
  %59 = vmatpush1.msra.mxu0 %v29
  %60 = vmatprep.subr.mxu0 0.0
  %61 = vmatpush1.msra.mxu0 %v30
  %62 = vmatprep.subr.mxu0 0.0
  %63 = vmatpush1.msra.mxu0 %v31
  %64 = vmatprep.subr.mxu0 0.0
  %65 = vmatpush1.msra.mxu0 %v32
  %66 = vmatprep.subr.mxu0 0.0
  %67 = vmatpush1.msra.mxu0 %v33
  %68 = vmatprep.subr.mxu0 0.0
  %69 = vmatpush1.msra.mxu0 %v34
  %70 = vmatprep.subr.mxu0 0.0
  %71 = vmatpush1.msra.mxu0 %v35
  %72 = vmatprep.subr.mxu0 0.0
  %73 = vmatpush1.msra.mxu0 %v36
  %74 = vmatprep.subr.mxu0 0.0
  %75 = vmatpush1.msra.mxu0 %v37
  %76 = vmatprep.subr.mxu0 0.0
  %77 = vmatpush1.msra.mxu0 %v52
  %78 = vmatprep.subr.mxu0 0.0
  %79 = vmatpush1.msra.mxu0 0.0
  %80 = vmatprep.subr.mxu0 0.0
  %81 = vmatpush1.msra.mxu0 0.0
  %82 = vmatprep.subr.mxu0 0.0
  %83 = vmatpush1.msra.mxu0 0.0
  %84 = vmatprep.subr.mxu0 0.0
  %85 = vmatpush1.msra.mxu0 0.0
  %86 = vmatprep.subr.mxu0 0.0
  %87 = vmatpush1.msra.mxu0 0.0
  %88 = vmatprep.subr.mxu0 0.0
  %89 = vmatpush1.msra.mxu0 0.0
  %90 = vmatprep.subr.mxu0 0.0
  %91 = vmatpush1.msra.mxu0 0.0
  %92 = vmatprep.subr.mxu0 0.0
  %93 = vmatpush1.msra.mxu0 0.0
  %94 = vmatprep.subr.mxu0 0.0
  %95 = vmatpush1.msra.mxu0 0.0
  %96 = vmatprep.subr.mxu0 0.0
  %97 = vmatpush1.msra.mxu0 0.0
  %98 = vmatprep.subr.mxu0 0.0
  %99 = vmatpush1.msra.mxu0 0.0
  %100 = vmatprep.subr.mxu0 0.0
  %101 = vmatpush1.msra.mxu0 0.0
  %102 = vmatprep.subr.mxu0 0.0
  %103 = vmatpush1.msra.mxu0 0.0
  %104 = vmatprep.subr.mxu0 0.0
  %105 = vmatpush1.msra.mxu0 0.0
  %106 = vmatprep.subr.mxu0 0.0
  %107 = vmatpush1.msra.mxu0 0.0
  %108 = vmatprep.subr.mxu0 0.0
  %109 = vmatpush1.msra.mxu0 0.0
  %110 = vmatprep.subr.mxu0 0.0
  %111 = vmatpush1.msra.mxu0 0.0
  %112 = vmatprep.subr.mxu0 0.0
  %113 = vmatpush1.msra.mxu0 0.0
  %114 = vmatprep.subr.mxu0 0.0
  %115 = vmatpush1.msra.mxu0 0.0
  %116 = vmatprep.subr.mxu0 0.0
  %117 = vmatpush1.msra.mxu0 0.0
  %118 = vmatprep.mubr.f32.mxu0 0.0
  %119 = vmatmul.mubr.f32.gmra.mrb[0].mxu0 %v48
  %v120 = vpop.f32.mrb[0].mxu0
  %v121 = vadd.f32 %v44, %v120
  %v122 = vpop.f32.mrb[0].mxu0
  %123 = vdwg.mxu0
  %v124 = vmax.f32 %v121, 0.0
  %v125 = vld [vmem:[%s3] sm:$0xff]
  %v126 = vld [vmem:[%s3 + $0x8] sm:$0xff]
  %v127 = vld [vmem:[%s3 + $0x10] sm:$0xff]
  %v128 = vld [vmem:[%s3 + $0x18] sm:$0xff]
  %v129 = vld [vmem:[%s3 + $0x20] sm:$0xff]
  %v130 = vld [vmem:[%s3 + $0x28] sm:$0xff]
  %v131 = vld [vmem:[%s3 + $0x30] sm:$0xff]
  %v132 = vld [vmem:[%s3 + $0x38] sm:$0xff]
  %v133 = vld [vmem:[%s3 + $0x40] sm:$0xff]
  %v134 = vld [vmem:[%s3 + $0x48] sm:$0xff]
  %v135 = vld [vmem:[%s3 + $0x50] sm:$0xff]
  %v136 = vld [vmem:[%s3 + $0x58] sm:$0xff]
  %v137 = vld [vmem:[%s3 + $0x60] sm:$0xff]
  %v138 = vld [vmem:[%s3 + $0x68] sm:$0xff]
  %v139 = vld [vmem:[%s3 + $0x70] sm:$0xff]
  %v140 = vld [vmem:[%s3 + $0x78] sm:$0xff]
  %v141 = vld [vmem:[%s4] sm:$0x1]
  %v143 = vlaneseq
  %v144 = vshrl.u32 %v143, 7
  %v145 = vsub.s32 0, %v144
  %v146 = vrot.slane %v141, %v145
  %148 = vmatprep.subr.mxu0 0.0
  %149 = vmatpush1.msra.mxu0 %v125
  %150 = vmatprep.subr.mxu0 0.0
  %151 = vmatpush1.msra.mxu0 %v126
  %152 = vmatprep.subr.mxu0 0.0
  %153 = vmatpush1.msra.mxu0 %v127
  %154 = vmatprep.subr.mxu0 0.0
  %155 = vmatpush1.msra.mxu0 %v128
  %156 = vmatprep.subr.mxu0 0.0
  %157 = vmatpush1.msra.mxu0 %v129
  %158 = vmatprep.subr.mxu0 0.0
  %159 = vmatpush1.msra.mxu0 %v130
  %160 = vmatprep.subr.mxu0 0.0
  %161 = vmatpush1.msra.mxu0 %v131
  %162 = vmatprep.subr.mxu0 0.0
  %163 = vmatpush1.msra.mxu0 %v132
  %164 = vmatprep.subr.mxu0 0.0
  %165 = vmatpush1.msra.mxu0 %v133
  %166 = vmatprep.subr.mxu0 0.0
  %167 = vmatpush1.msra.mxu0 %v134
  %168 = vmatprep.subr.mxu0 0.0
  %169 = vmatpush1.msra.mxu0 %v135
  %170 = vmatprep.subr.mxu0 0.0
  %171 = vmatpush1.msra.mxu0 %v136
  %172 = vmatprep.subr.mxu0 0.0
  %173 = vmatpush1.msra.mxu0 %v137
  %174 = vmatprep.subr.mxu0 0.0
  %175 = vmatpush1.msra.mxu0 %v138
  %176 = vmatprep.subr.mxu0 0.0
  %177 = vmatpush1.msra.mxu0 %v139
  %178 = vmatprep.subr.mxu0 0.0
  %179 = vmatpush1.msra.mxu0 %v140
  %180 = vmatprep.subr.mxu0 0.0
  %181 = vmatpush1.msra.mxu0 0.0
  %182 = vmatprep.subr.mxu0 0.0
  %183 = vmatpush1.msra.mxu0 0.0
  %184 = vmatprep.subr.mxu0 0.0
  %185 = vmatpush1.msra.mxu0 0.0
  %186 = vmatprep.subr.mxu0 0.0
  %187 = vmatpush1.msra.mxu0 0.0
  %188 = vmatprep.subr.mxu0 0.0
  %189 = vmatpush1.msra.mxu0 0.0
  %190 = vmatprep.subr.mxu0 0.0
  %191 = vmatpush1.msra.mxu0 0.0
  %192 = vmatprep.subr.mxu0 0.0
  %193 = vmatpush1.msra.mxu0 0.0
  %194 = vmatprep.subr.mxu0 0.0
  %195 = vmatpush1.msra.mxu0 0.0
  %196 = vmatprep.subr.mxu0 0.0
  %197 = vmatpush1.msra.mxu0 0.0
  %198 = vmatprep.subr.mxu0 0.0
  %199 = vmatpush1.msra.mxu0 0.0
  %200 = vmatprep.subr.mxu0 0.0
  %201 = vmatpush1.msra.mxu0 0.0
  %202 = vmatprep.subr.mxu0 0.0
  %203 = vmatpush1.msra.mxu0 0.0
  %204 = vmatprep.subr.mxu0 0.0
  %205 = vmatpush1.msra.mxu0 0.0
  %206 = vmatprep.subr.mxu0 0.0
  %207 = vmatpush1.msra.mxu0 0.0
  %208 = vmatprep.subr.mxu0 0.0
  %209 = vmatpush1.msra.mxu0 0.0
  %210 = vmatprep.subr.mxu0 0.0
  %211 = vmatpush1.msra.mxu0 0.0
  %212 = vmatprep.mubr.f32.mxu0 0.0
  %213 = vmatmul.mubr.f32.gmra.mrb[0].mxu0 %v124
  %v214 = vpop.f32.mrb[0].mxu0
  %v215 = vadd.f32 %v146, %v214
  %v216 = vpop.f32.mrb[0].mxu0
  %217 = vdwg.mxu0
  %v218 = vmax.f32 %v215, 0.0
  %v219 = vld [vmem:[%s5] sm:$0xff]
  %v220 = vld [vmem:[%s5 + $0x8] sm:$0xff]
  %v221 = vld [vmem:[%s5 + $0x10] sm:$0xff]
  %v222 = vld [vmem:[%s5 + $0x18] sm:$0xff]
  %v223 = vld [vmem:[%s5 + $0x20] sm:$0xff]
  %v224 = vld [vmem:[%s5 + $0x28] sm:$0xff]
  %v225 = vld [vmem:[%s5 + $0x30] sm:$0xff]
  %v226 = vld [vmem:[%s5 + $0x38] sm:$0xff]
  %v227 = vld [vmem:[%s5 + $0x40] sm:$0xff]
  %v228 = vld [vmem:[%s5 + $0x48] sm:$0xff]
  %v229 = vld [vmem:[%s5 + $0x50] sm:$0xff]
  %v230 = vld [vmem:[%s5 + $0x58] sm:$0xff]
  %v231 = vld [vmem:[%s5 + $0x60] sm:$0xff]
  %v232 = vld [vmem:[%s5 + $0x68] sm:$0xff]
  %v233 = vld [vmem:[%s5 + $0x70] sm:$0xff]
  %v234 = vld [vmem:[%s5 + $0x78] sm:$0xff]
  %v235 = vld [vmem:[%s6] sm:$0x1]
  %v237 = vlaneseq
  %v238 = vshrl.u32 %v237, 7
  %v239 = vsub.s32 0, %v238
  %v240 = vrot.slane %v235, %v239
  %242 = vmatprep.subr.mxu0 0.0
  %243 = vmatpush1.msra.mxu0 %v219
  %244 = vmatprep.subr.mxu0 0.0
  %245 = vmatpush1.msra.mxu0 %v220
  %246 = vmatprep.subr.mxu0 0.0
  %247 = vmatpush1.msra.mxu0 %v221
  %248 = vmatprep.subr.mxu0 0.0
  %249 = vmatpush1.msra.mxu0 %v222
  %250 = vmatprep.subr.mxu0 0.0
  %251 = vmatpush1.msra.mxu0 %v223
  %252 = vmatprep.subr.mxu0 0.0
  %253 = vmatpush1.msra.mxu0 %v224
  %254 = vmatprep.subr.mxu0 0.0
  %255 = vmatpush1.msra.mxu0 %v225
  %256 = vmatprep.subr.mxu0 0.0
  %257 = vmatpush1.msra.mxu0 %v226
  %258 = vmatprep.subr.mxu0 0.0
  %259 = vmatpush1.msra.mxu0 %v227
  %260 = vmatprep.subr.mxu0 0.0
  %261 = vmatpush1.msra.mxu0 %v228
  %262 = vmatprep.subr.mxu0 0.0
  %263 = vmatpush1.msra.mxu0 %v229
  %264 = vmatprep.subr.mxu0 0.0
  %265 = vmatpush1.msra.mxu0 %v230
  %266 = vmatprep.subr.mxu0 0.0
  %267 = vmatpush1.msra.mxu0 %v231
  %268 = vmatprep.subr.mxu0 0.0
  %269 = vmatpush1.msra.mxu0 %v232
  %270 = vmatprep.subr.mxu0 0.0
  %271 = vmatpush1.msra.mxu0 %v233
  %272 = vmatprep.subr.mxu0 0.0
  %273 = vmatpush1.msra.mxu0 %v234
  %274 = vmatprep.subr.mxu0 0.0
  %275 = vmatpush1.msra.mxu0 0.0
  %276 = vmatprep.subr.mxu0 0.0
  %277 = vmatpush1.msra.mxu0 0.0
  %278 = vmatprep.subr.mxu0 0.0
  %279 = vmatpush1.msra.mxu0 0.0
  %280 = vmatprep.subr.mxu0 0.0
  %281 = vmatpush1.msra.mxu0 0.0
  %282 = vmatprep.subr.mxu0 0.0
  %283 = vmatpush1.msra.mxu0 0.0
  %284 = vmatprep.subr.mxu0 0.0
  %285 = vmatpush1.msra.mxu0 0.0
  %286 = vmatprep.subr.mxu0 0.0
  %287 = vmatpush1.msra.mxu0 0.0
  %288 = vmatprep.subr.mxu0 0.0
  %289 = vmatpush1.msra.mxu0 0.0
  %290 = vmatprep.subr.mxu0 0.0
  %291 = vmatpush1.msra.mxu0 0.0
  %292 = vmatprep.subr.mxu0 0.0
  %293 = vmatpush1.msra.mxu0 0.0
  %294 = vmatprep.subr.mxu0 0.0
  %295 = vmatpush1.msra.mxu0 0.0
  %296 = vmatprep.subr.mxu0 0.0
  %297 = vmatpush1.msra.mxu0 0.0
  %298 = vmatprep.subr.mxu0 0.0
  %299 = vmatpush1.msra.mxu0 0.0
  %300 = vmatprep.subr.mxu0 0.0
  %301 = vmatpush1.msra.mxu0 0.0
  %302 = vmatprep.subr.mxu0 0.0
  %303 = vmatpush1.msra.mxu0 0.0
  %304 = vmatprep.subr.mxu0 0.0
  %305 = vmatpush1.msra.mxu0 0.0
  %306 = vmatprep.mubr.f32.mxu0 0.0
  %307 = vmatmul.mubr.f32.gmra.mrb[0].mxu0 %v218
  %v308 = vpop.f32.mrb[0].mxu0
  %v309 = vadd.f32 %v240, %v308
  %v310 = vpop.f32.mrb[0].mxu0
  %311 = vdwg.mxu0
  %312 = vst.msk [vmem:[%s7] sm:$0xff] %vm46, %v309
  // Predicated region
  $region30: #{powerball_mlp_forward.1} parent=0 // pred_check
    _
  $region31: #{powerball_mlp_forward.1} parent=0 // pred_check_branch
    %314 = sbr.rel (0) target = $region33
  $region32: #{powerball_mlp_forward.1} parent=0 // pred_region
    _
  $region33: #{powerball_mlp_forward.1} parent=0 // pred_fallthru
    _
  // Predicated region
  $region34: #{powerball_mlp_forward.1} parent=0 // pred_check
    _
  $region35: #{powerball_mlp_forward.1} parent=0 // pred_check_branch
    %316 = sbr.rel (0) target = $region37
  $region36: #{powerball_mlp_forward.1} parent=0 // pred_region
    _
  $region37: #{powerball_mlp_forward.1} parent=0 // pred_fallthru
    _

</llo_original>
